<compile_context>
chip_gen: v7x
topology: tpu7x:2x2x1
jax: 0.10.0
libtpu: 0.0.40
codegen_flags: <defaults>
</compile_context>

<pallas_src>
import functools

import jax
import jax.numpy as jnp
from jax import lax
from jax.experimental import pallas as pl
from jax.experimental.pallas import tpu as pltpu

BN_EPS = 1e-5


def _round_up(x, m):
    return (x + m - 1) // m * m


def _vmem_capacity_bytes():
    try:
        cap = int(getattr(pltpu.get_tpu_info(), "vmem_capacity_bytes", 0))
        if cap > 0:
            return cap
    except Exception:
        pass
    return 64 << 20  # conservative fallback (v7x per-core VMEM) — safe on every generation


def _pick_tile_m(M, Kp, Cp, block_m_cap, in_itemsize):
    """Largest M-tile whose double-buffered working set fits a per-generation VMEM budget."""
    cap = _vmem_capacity_bytes()
    budget = int(cap * 0.7)            # ~45 MiB on v7x (64 MiB), ~90 MiB on v5e/v6e (128 MiB)
    fixed = 2 * Kp * Cp * in_itemsize + (2 << 20)          # weight buffers + slack
    per_row = 2 * Kp * in_itemsize + 2 * Cp * 4 + Cp * 4   # x bufs + out bufs + f32 y temp
    tm = max((budget - fixed) // per_row, 8)
    tm = min(int(tm), block_m_cap, _round_up(M, 8))
    return max(tm // 8 * 8, 8)
    # TODO(synk): for very wide layers (huge Kp*Cp) a Cout tile would be needed too.


# --------------------------------------------------------------------------- #
# Pass 1 (stats only): conv tile + per-channel partial sum / sum-of-squares.   #
# --------------------------------------------------------------------------- #
def _conv_stats_kernel(x_ref, w_ref, sum_ref, ssq_ref):
    """x_ref (1,TM,Kp) @ w_ref (1,Kp,Cp) -> (8,Cp) partial channel sums per (g, m) tile.
    Reductions stay off the MXU weight path: y is folded into 8 sublane-group rows with
    pure VPU adds; the final 8-row / per-tile reduction happens in the tiny JAX finalize."""
    y = jnp.dot(x_ref[0], w_ref[0], preferred_element_type=jnp.float32)   # (TM, Cp) f32
    tm, cp = y.shape
    yg = y.reshape(tm // 8, 8, cp)              # splits the major axis only (tile-preserving)
    sum_ref[0, 0] = jnp.sum(yg, axis=0)         # (8, Cp) partial channel sums
    ssq_ref[0, 0] = jnp.sum(yg * yg, axis=0)    # (8, Cp) partial channel sums of squares


# --------------------------------------------------------------------------- #
# Pass 2: recompute conv tile + fused normalize + affine + ReLU, single store. #
# --------------------------------------------------------------------------- #
def _conv_bn_act_kernel(x_ref, w_ref, scale_ref, shift_ref, o_ref):
    # Recomputing the matmul is cheaper than a y HBM round-trip for RegNet-sized K
    # (1x1 / 3x3 layers); see TODO in the wrapper for the very-large-K alternative.
    y = jnp.dot(x_ref[0], w_ref[0], preferred_element_type=jnp.float32)   # (TM, Cp) f32
    o_ref[0] = jnp.maximum(y * scale_ref[0] + shift_ref[0], 0.0).astype(o_ref.dtype)


def _extract_patches(x_nhwc, kh, kw, stride, padding):
    """(N,H,W,C) -> (N*OH*OW, kh*kw, C) tap-major patches with a single XLA copy.
    1x1 convs take a reshape-only fast path (no im2col blow-up)."""
    N, H, W, C = x_nhwc.shape
    OH = (H + 2 * padding - kh) // stride + 1
    OW = (W + 2 * padding - kw) // stride + 1
    if padding:
        x_nhwc = jnp.pad(x_nhwc, ((0, 0), (padding, padding), (padding, padding), (0, 0)))
    if kh == 1 and kw == 1:
        p = x_nhwc[:, ::stride, ::stride, :][:, :OH, :OW, :]
        return p.reshape(N * OH * OW, 1, C), OH, OW
    # TODO(synk): for kh*kw>1 this still materializes kh*kw x the input in HBM; an
    # in-kernel halo (shifted-slice tap accumulation against the MXU acc) would remove it.
    taps = [x_nhwc[:, i:i + stride * OH:stride, j:j + stride * OW:stride, :]
            for i in range(kh) for j in range(kw)]
    p = jnp.stack(taps, axis=3)                         # (N, OH, OW, kh*kw, C)
    return p.reshape(N * OH * OW, kh * kw, C), OH, OW


@functools.partial(jax.jit, static_argnames=(
    "kernel_s", "stride", "padding", "groups", "tm", "mxu_dtype", "vmem_limit"))
def _conv_bn_act_impl(x_nchw, weight, gamma, beta, *, kernel_s, stride, padding,
                      groups, tm, mxu_dtype, vmem_limit):
    N, Cin, H, W = x_nchw.shape
    Cout = weight.shape[0]
    kh = kw = kernel_s
    G = groups
    cin_g = Cin // G
    cout_g = Cout // G

    # TODO(synk): output stays NCHW to match the PyTorch module; NHWC consumers could drop
    # both boundary transposes (each is an extra full HBM pass over the activation).
    x_nhwc = jnp.transpose(x_nchw, (0, 2, 3, 1))
    patches, OH, OW = _extract_patches(x_nhwc, kh, kw, stride, padding)
    M = N * OH * OW
    K = kh * kw * cin_g

    Kp = _round_up(K, 128)
    Cp = _round_up(cout_g, 128)
    Mp = _round_up(M, tm)
    n_m = Mp // tm
    grid = (G, n_m)

    # Group-major K layout (tap-major, channel-minor inside each group); one fused copy.
    p = patches.reshape(M, kh * kw, G, cin_g)
    p = jnp.transpose(p, (2, 0, 1, 3)).reshape(G, M, K)
    p = jnp.pad(p, ((0, 0), (0, Mp - M), (0, Kp - K))).astype(mxu_dtype)

    # Weights (Cout, cin_g, kh, kw) -> (G, Kp, Cp), K ordering matched to the patches.
    w = weight.reshape(G, cout_g, cin_g, kh, kw)
    w = jnp.transpose(w, (0, 3, 4, 2, 1)).reshape(G, K, cout_g)
    w = jnp.pad(w, ((0, 0), (0, Kp - K), (0, Cp - cout_g))).astype(mxu_dtype)

    itemsize = jnp.dtype(mxu_dtype).itemsize
    in_bytes = p.size * itemsize + w.size * itemsize

    # ---- Pass 1: per-(group, M-tile) partial channel statistics (stats only). ---------
    # NOTE: the patches BlockSpec could be raised to pipeline_mode=pl.Buffered(3) for
    # low-Cp layers if the input DMA becomes exposed; left at the default double buffer.
    csum, cssq = pl.pallas_call(
        _conv_stats_kernel,
        grid=grid,
        in_specs=[
            pl.BlockSpec((1, tm, Kp), lambda g, m: (g, m, 0)),     # patches tile
            pl.BlockSpec((1, Kp, Cp), lambda g, m: (g, 0, 0)),     # group weights (resident)
        ],
        out_specs=[
            pl.BlockSpec((1, 1, 8, Cp), lambda g, m: (g, m, 0, 0)),
            pl.BlockSpec((1, 1, 8, Cp), lambda g, m: (g, m, 0, 0)),
        ],
        out_shape=(
            jax.ShapeDtypeStruct((G, n_m, 8, Cp), jnp.float32),
            jax.ShapeDtypeStruct((G, n_m, 8, Cp), jnp.float32),
        ),
        compiler_params=pltpu.CompilerParams(
            dimension_semantics=("parallel", "parallel"),
            vmem_limit_bytes=vmem_limit),
        cost_estimate=pl.CostEstimate(
            flops=int(2 * G * Mp * Kp * Cp + 2 * G * Mp * Cp),
            transcendentals=0,
            bytes_accessed=int(in_bytes + 2 * G * n_m * 8 * Cp * 4)),
    )(p, w)

    # ---- Finalize global batch statistics (tiny; plain JAX). ---------------------------
    # Zero-padded rows/channels contribute 0 to both sums, so dividing by the real M gives
    # exact global stats. Biased variance, as PyTorch BN uses for normalization.
    tot = jnp.sum(csum, axis=(1, 2))                        # (G, Cp)
    tot2 = jnp.sum(cssq, axis=(1, 2))
    mean = tot / M
    # TODO(synk): E[y^2]-E[y]^2 in f32 is cancellation-prone for huge-mean activations;
    # switch to centered / pairwise accumulation if tighter BN stats are ever required.
    var = jnp.maximum(tot2 / M - mean * mean, 0.0)
    inv_std = lax.rsqrt(var + BN_EPS)
    gamma_p = jnp.pad(gamma.reshape(G, cout_g), ((0, 0), (0, Cp - cout_g)),
                      constant_values=1.0)
    beta_p = jnp.pad(beta.reshape(G, cout_g), ((0, 0), (0, Cp - cout_g)))
    scale = (gamma_p * inv_std)[:, None, :]                 # (G, 1, Cp)
    shift = (beta_p - mean * gamma_p * inv_std)[:, None, :]
    # TODO(synk): PyTorch BN(train) also updates running_mean/running_var (unbiased var);
    # that stateful side effect is not part of the forward output and is not produced here.

    # ---- Pass 2: recompute conv tile + fused BN + ReLU, single lane-dense store. -------
    # TODO(synk): for very large K (>~2k) storing a bf16 y in pass 1 instead of recomputing
    # the matmul here would be cheaper; RegNet's 1x1/3x3 layers all favor recompute.
    out = pl.pallas_call(
        _conv_bn_act_kernel,
        grid=grid,
        in_specs=[
            pl.BlockSpec((1, tm, Kp), lambda g, m: (g, m, 0)),
            pl.BlockSpec((1, Kp, Cp), lambda g, m: (g, 0, 0)),
            pl.BlockSpec((1, 1, Cp), lambda g, m: (g, 0, 0)),
            pl.BlockSpec((1, 1, Cp), lambda g, m: (g, 0, 0)),
        ],
        out_specs=pl.BlockSpec((1, tm, Cp), lambda g, m: (g, m, 0)),
        out_shape=jax.ShapeDtypeStruct((G, Mp, Cp), jnp.float32),
        compiler_params=pltpu.CompilerParams(
            dimension_semantics=("parallel", "parallel"),
            vmem_limit_bytes=vmem_limit),
        cost_estimate=pl.CostEstimate(
            flops=int(2 * G * Mp * Kp * Cp + 3 * G * Mp * Cp),
            transcendentals=0,
            bytes_accessed=int(in_bytes + 4 * G * Cp * 4 + G * Mp * Cp * 4)),
    )(p, w, scale, shift)

    # Drop padding and restore (N, Cout, OH, OW) with PyTorch grouped-channel ordering.
    out = out[:, :M, :cout_g]                               # (G, M, cout_g)
    out = jnp.transpose(out, (1, 0, 2)).reshape(N, OH, OW, Cout)
    return jnp.transpose(out, (0, 3, 1, 2))


def conv_bn_act(x_nchw, weight, gamma, beta, *, kernel_s=1, stride=1, padding=0,
                groups=1, block_m=1024, mxu_dtype=jnp.bfloat16):
    """Forward pass of ConvBNAct (Conv2d(bias=False) + BatchNorm2d(train) + ReLU).

    x: (N, Cin, H, W) f32; weight: (Cout, Cin//groups, KH, KW) f32 (PyTorch OIHW layout);
    gamma/beta: (Cout,). Returns (N, Cout, OH, OW) f32.  MXU operands are cast to
    `mxu_dtype` (bf16 by default, f32 accumulation always kept); `block_m` caps the
    VMEM-derived M tile.
    """
    N, Cin, H, W = x_nchw.shape
    Cout = weight.shape[0]
    assert Cin % groups == 0 and Cout % groups == 0
    OH = (H + 2 * padding - kernel_s) // stride + 1
    OW = (W + 2 * padding - kernel_s) // stride + 1
    M = N * OH * OW
    Kp = _round_up(kernel_s * kernel_s * (Cin // groups), 128)
    Cp = _round_up(Cout // groups, 128)
    itemsize = jnp.dtype(mxu_dtype).itemsize
    tm = _pick_tile_m(M, Kp, Cp, block_m, itemsize)
    vmem_limit = int(_vmem_capacity_bytes() * 0.9)
    return _conv_bn_act_impl(x_nchw, weight, gamma, beta,
                             kernel_s=kernel_s, stride=stride, padding=padding,
                             groups=groups, tm=tm, mxu_dtype=mxu_dtype,
                             vmem_limit=vmem_limit)


def _reference(x_nchw, weight, gamma, beta, *, kernel_s, stride, padding, groups):
    """Pure-JAX reference matching PyTorch Conv2d + BatchNorm2d(train) + ReLU."""
    y = lax.conv_general_dilated(
        x_nchw, weight,
        window_strides=(stride, stride),
        padding=((padding, padding), (padding, padding)),
        dimension_numbers=("NCHW", "OIHW", "NCHW"),
        feature_group_count=groups,
    )
    mean = jnp.mean(y, axis=(0, 2, 3), keepdims=True)
    var = jnp.mean((y - mean) ** 2, axis=(0, 2, 3), keepdims=True)
    y_hat = (y - mean) * lax.rsqrt(var + BN_EPS)
    out = y_hat * gamma.reshape(1, -1, 1, 1) + beta.reshape(1, -1, 1, 1)
    return jnp.maximum(out, 0.0)


if __name__ == "__main__":
    key = jax.random.PRNGKey(0)
    k_x, k_w, k_g, k_b, k_w2 = jax.random.split(key, 5)

    N, Cin, H, W = 2, 4, 16, 16
    Cout, K_S, STRIDE, PAD, GROUPS = 8, 3, 1, 1, 1

    x = jax.random.normal(k_x, (N, Cin, H, W), dtype=jnp.float32)
    weight = jax.random.normal(k_w, (Cout, Cin // GROUPS, K_S, K_S), dtype=jnp.float32) * 0.1
    gamma = 1.0 + 0.1 * jax.random.normal(k_g, (Cout,), dtype=jnp.float32)
    beta = 0.1 * jax.random.normal(k_b, (Cout,), dtype=jnp.float32)

    # Case 1: default bf16 MXU path, block_m=128 -> 4 M tiles, exercising the per-tile
    # partial-stats reduction across the (parallel) m axis.
    out = conv_bn_act(x, weight, gamma, beta,
                      kernel_s=K_S, stride=STRIDE, padding=PAD, groups=GROUPS,
                      block_m=128)
    out = jax.block_until_ready(out)
    ref = _reference(x, weight, gamma, beta,
                     kernel_s=K_S, stride=STRIDE, padding=PAD, groups=GROUPS)
    assert out.shape == (N, Cout, H, W)
    assert jnp.max(jnp.abs(out - ref)) < 6e-2, "case 1 (bf16) mismatch vs reference"

    # Case 2: grouped + strided conv (groups folded into the Pallas grid), bf16 path.
    G2, STRIDE2, PAD2 = 2, 2, 1
    weight2 = jax.random.normal(k_w2, (Cout, Cin // G2, K_S, K_S), dtype=jnp.float32) * 0.1
    out2 = conv_bn_act(x, weight2, gamma, beta,
                       kernel_s=K_S, stride=STRIDE2, padding=PAD2, groups=G2,
                       block_m=128)
    out2 = jax.block_until_ready(out2)
    ref2 = _reference(x, weight2, gamma, beta,
                      kernel_s=K_S, stride=STRIDE2, padding=PAD2, groups=G2)
    assert out2.shape == ref2.shape
    assert jnp.max(jnp.abs(out2 - ref2)) < 6e-2, "case 2 (grouped bf16) mismatch vs reference"

    # Case 3: f32 MXU operands -> tight tolerance; validates the pipeline independently of
    # bf16 rounding.
    out3 = conv_bn_act(x, weight, gamma, beta,
                       kernel_s=K_S, stride=STRIDE, padding=PAD, groups=GROUPS,
                       mxu_dtype=jnp.float32)
    out3 = jax.block_until_ready(out3)
    assert jnp.max(jnp.abs(out3 - ref)) < 1e-3, "case 3 (f32) mismatch vs reference"

    print("KERNEL_OK")
</pallas_src>

<mosaic_0001>
module attributes {stable_mosaic.version = 11 : i64} {
  func.func @_conv_stats_kernel(%arg0: i32, %arg1: i32, %arg2: memref<1x128x128xbf16, #tpu.memory_space<vmem>>, %arg3: memref<1x128x128xbf16, #tpu.memory_space<vmem>>, %arg4: memref<1x1x8x128xf32, #tpu.memory_space<vmem>>, %arg5: memref<1x1x8x128xf32, #tpu.memory_space<vmem>>) attributes {dimension_semantics = [#tpu.dimension_semantics<parallel>, #tpu.dimension_semantics<parallel>], iteration_bounds = array<i64: 1, 4>, scalar_prefetch = 0 : i64, scratch_operands = 0 : i64, tpu.core_type = #tpu.core_type<tc>, window_params = [{transform_indices = @transform_0, window_bounds = array<i64: 1, 128, 128>}, {transform_indices = @transform_1, window_bounds = array<i64: 1, 128, 128>}, {transform_indices = @transform_2, window_bounds = array<i64: 1, 1, 8, 128>}, {transform_indices = @transform_3, window_bounds = array<i64: 1, 1, 8, 128>}]} {
    %c0 = arith.constant 0 : index
    %c0_0 = arith.constant 0 : index
    %c0_1 = arith.constant 0 : index
    %0 = vector.load %arg2[%c0, %c0_0, %c0_1] : memref<1x128x128xbf16, #tpu.memory_space<vmem>>, vector<1x128x128xbf16>
    %1 = vector.shape_cast %0 : vector<1x128x128xbf16> to vector<128x128xbf16>
    %c0_2 = arith.constant 0 : index
    %c0_3 = arith.constant 0 : index
    %c0_4 = arith.constant 0 : index
    %2 = vector.load %arg3[%c0_2, %c0_3, %c0_4] : memref<1x128x128xbf16, #tpu.memory_space<vmem>>, vector<1x128x128xbf16>
    %3 = vector.shape_cast %2 : vector<1x128x128xbf16> to vector<128x128xbf16>
    %cst = arith.constant dense<0.000000e+00> : vector<128x128xf32>
    %4 = tpu.matmul %1, %3, %cst {dimension_numbers = #tpu.dot_dimension_numbers<[1], [0], [0], [1], [0, 0, 1, 1], [], []>} : vector<128x128xbf16>, vector<128x128xbf16>, vector<128x128xf32> -> vector<128x128xf32>
    %5 = vector.shape_cast %4 : vector<128x128xf32> to vector<16x8x128xf32>
    %cst_5 = arith.constant dense<0.000000e+00> : vector<8x128xf32>
    %6 = vector.multi_reduction <add>, %5, %cst_5 [0] : vector<16x8x128xf32> to vector<8x128xf32>
    %c0_6 = arith.constant 0 : index
    %c0_7 = arith.constant 0 : index
    %c0_8 = arith.constant 0 : index
    %c0_9 = arith.constant 0 : index
    %7 = vector.load %arg4[%c0_6, %c0_7, %c0_8, %c0_9] : memref<1x1x8x128xf32, #tpu.memory_space<vmem>>, vector<1x1x8x128xf32>
    %8 = vector.shape_cast %7 : vector<1x1x8x128xf32> to vector<8x128xf32>
    %9 = vector.shape_cast %6 : vector<8x128xf32> to vector<1x1x8x128xf32>
    tpu.vector_store %arg4[%c0_6, %c0_7, %c0_8, %c0_9], %9 {strides = array<i32>} : memref<1x1x8x128xf32, #tpu.memory_space<vmem>>, vector<1x1x8x128xf32>,
    %10 = arith.mulf %5, %5 : vector<16x8x128xf32>
    %cst_10 = arith.constant dense<0.000000e+00> : vector<8x128xf32>
    %11 = vector.multi_reduction <add>, %10, %cst_10 [0] : vector<16x8x128xf32> to vector<8x128xf32>
    %c0_11 = arith.constant 0 : index
    %c0_12 = arith.constant 0 : index
    %c0_13 = arith.constant 0 : index
    %c0_14 = arith.constant 0 : index
    %12 = vector.load %arg5[%c0_11, %c0_12, %c0_13, %c0_14] : memref<1x1x8x128xf32, #tpu.memory_space<vmem>>, vector<1x1x8x128xf32>
    %13 = vector.shape_cast %12 : vector<1x1x8x128xf32> to vector<8x128xf32>
    %14 = vector.shape_cast %11 : vector<8x128xf32> to vector<1x1x8x128xf32>
    tpu.vector_store %arg5[%c0_11, %c0_12, %c0_13, %c0_14], %14 {strides = array<i32>} : memref<1x1x8x128xf32, #tpu.memory_space<vmem>>, vector<1x1x8x128xf32>,
    return
  }
  func.func @transform_0(%arg0: i32, %arg1: i32) -> (i32, i32, i32) {
    %c0_i32 = arith.constant 0 : i32
    %c0_i32_0 = arith.constant 0 : i32
    return %arg0, %arg1, %c0_i32 : i32, i32, i32
  }
  func.func @transform_1(%arg0: i32, %arg1: i32) -> (i32, i32, i32) {
    %c0_i32 = arith.constant 0 : i32
    %c0_i32_0 = arith.constant 0 : i32
    %c0_i32_1 = arith.constant 0 : i32
    return %arg0, %c0_i32, %c0_i32_0 : i32, i32, i32
  }
  func.func @transform_2(%arg0: i32, %arg1: i32) -> (i32, i32, i32, i32) {
    %c0_i32 = arith.constant 0 : i32
    %c0_i32_0 = arith.constant 0 : i32
    %c0_i32_1 = arith.constant 0 : i32
    return %arg0, %arg1, %c0_i32, %c0_i32_0 : i32, i32, i32, i32
  }
  func.func @transform_3(%arg0: i32, %arg1: i32) -> (i32, i32, i32, i32) {
    %c0_i32 = arith.constant 0 : i32
    %c0_i32_0 = arith.constant 0 : i32
    %c0_i32_1 = arith.constant 0 : i32
    return %arg0, %arg1, %c0_i32, %c0_i32_0 : i32, i32, i32, i32
  }
}

module attributes {stable_mosaic.version = 11 : i64} {
  func.func @_conv_bn_act_kernel(%arg0: i32, %arg1: i32, %arg2: memref<1x128x128xbf16, #tpu.memory_space<vmem>>, %arg3: memref<1x128x128xbf16, #tpu.memory_space<vmem>>, %arg4: memref<1x1x128xf32, #tpu.memory_space<vmem>>, %arg5: memref<1x1x128xf32, #tpu.memory_space<vmem>>, %arg6: memref<1x128x128xf32, #tpu.memory_space<vmem>>) attributes {dimension_semantics = [#tpu.dimension_semantics<parallel>, #tpu.dimension_semantics<parallel>], iteration_bounds = array<i64: 1, 4>, scalar_prefetch = 0 : i64, scratch_operands = 0 : i64, tpu.core_type = #tpu.core_type<tc>, window_params = [{transform_indices = @transform_0, window_bounds = array<i64: 1, 128, 128>}, {transform_indices = @transform_1, window_bounds = array<i64: 1, 128, 128>}, {transform_indices = @transform_2, window_bounds = array<i64: 1, 1, 128>}, {transform_indices = @transform_3, window_bounds = array<i64: 1, 1, 128>}, {transform_indices = @transform_4, window_bounds = array<i64: 1, 128, 128>}]} {
    %c0 = arith.constant 0 : index
    %c0_0 = arith.constant 0 : index
    %c0_1 = arith.constant 0 : index
    %0 = vector.load %arg2[%c0, %c0_0, %c0_1] : memref<1x128x128xbf16, #tpu.memory_space<vmem>>, vector<1x128x128xbf16>
    %1 = vector.shape_cast %0 : vector<1x128x128xbf16> to vector<128x128xbf16>
    %c0_2 = arith.constant 0 : index
    %c0_3 = arith.constant 0 : index
    %c0_4 = arith.constant 0 : index
    %2 = vector.load %arg3[%c0_2, %c0_3, %c0_4] : memref<1x128x128xbf16, #tpu.memory_space<vmem>>, vector<1x128x128xbf16>
    %3 = vector.shape_cast %2 : vector<1x128x128xbf16> to vector<128x128xbf16>
    %cst = arith.constant dense<0.000000e+00> : vector<128x128xf32>
    %4 = tpu.matmul %1, %3, %cst {dimension_numbers = #tpu.dot_dimension_numbers<[1], [0], [0], [1], [0, 0, 1, 1], [], []>} : vector<128x128xbf16>, vector<128x128xbf16>, vector<128x128xf32> -> vector<128x128xf32>
    %c0_5 = arith.constant 0 : index
    %c0_6 = arith.constant 0 : index
    %c0_7 = arith.constant 0 : index
    %5 = vector.load %arg4[%c0_5, %c0_6, %c0_7] : memref<1x1x128xf32, #tpu.memory_space<vmem>>, vector<1x1x128xf32>
    %6 = vector.shape_cast %5 : vector<1x1x128xf32> to vector<1x128xf32>
    %7 = vector.broadcast %6 : vector<1x128xf32> to vector<128x128xf32>
    %8 = arith.mulf %4, %7 : vector<128x128xf32>
    %c0_8 = arith.constant 0 : index
    %c0_9 = arith.constant 0 : index
    %c0_10 = arith.constant 0 : index
    %9 = vector.load %arg5[%c0_8, %c0_9, %c0_10] : memref<1x1x128xf32, #tpu.memory_space<vmem>>, vector<1x1x128xf32>
    %10 = vector.shape_cast %9 : vector<1x1x128xf32> to vector<1x128xf32>
    %11 = vector.broadcast %10 : vector<1x128xf32> to vector<128x128xf32>
    %12 = arith.addf %8, %11 : vector<128x128xf32>
    %cst_11 = arith.constant 0.000000e+00 : f32
    %13 = vector.broadcast %cst_11 : f32 to vector<128x128xf32>
    %14 = arith.maximumf %12, %13 : vector<128x128xf32>
    %c0_12 = arith.constant 0 : index
    %c0_13 = arith.constant 0 : index
    %c0_14 = arith.constant 0 : index
    %15 = vector.load %arg6[%c0_12, %c0_13, %c0_14] : memref<1x128x128xf32, #tpu.memory_space<vmem>>, vector<1x128x128xf32>
    %16 = vector.shape_cast %15 : vector<1x128x128xf32> to vector<128x128xf32>
    %17 = vector.shape_cast %14 : vector<128x128xf32> to vector<1x128x128xf32>
    tpu.vector_store %arg6[%c0_12, %c0_13, %c0_14], %17 {strides = array<i32>} : memref<1x128x128xf32, #tpu.memory_space<vmem>>, vector<1x128x128xf32>,
    return
  }
  func.func @transform_0(%arg0: i32, %arg1: i32) -> (i32, i32, i32) {
    %c0_i32 = arith.constant 0 : i32
    %c0_i32_0 = arith.constant 0 : i32
    return %arg0, %arg1, %c0_i32 : i32, i32, i32
  }
  func.func @transform_1(%arg0: i32, %arg1: i32) -> (i32, i32, i32) {
    %c0_i32 = arith.constant 0 : i32
    %c0_i32_0 = arith.constant 0 : i32
    %c0_i32_1 = arith.constant 0 : i32
    return %arg0, %c0_i32, %c0_i32_0 : i32, i32, i32
  }
  func.func @transform_2(%arg0: i32, %arg1: i32) -> (i32, i32, i32) {
    %c0_i32 = arith.constant 0 : i32
    %c0_i32_0 = arith.constant 0 : i32
    %c0_i32_1 = arith.constant 0 : i32
    return %arg0, %c0_i32, %c0_i32_0 : i32, i32, i32
  }
  func.func @transform_3(%arg0: i32, %arg1: i32) -> (i32, i32, i32) {
    %c0_i32 = arith.constant 0 : i32
    %c0_i32_0 = arith.constant 0 : i32
    %c0_i32_1 = arith.constant 0 : i32
    return %arg0, %c0_i32, %c0_i32_0 : i32, i32, i32
  }
  func.func @transform_4(%arg0: i32, %arg1: i32) -> (i32, i32, i32) {
    %c0_i32 = arith.constant 0 : i32
    %c0_i32_0 = arith.constant 0 : i32
    return %arg0, %arg1, %c0_i32 : i32, i32, i32
  }
}

</mosaic_0001>

<llo_original>
// kernel: _conv_bn_act_impl.2
$region0: #{_conv_bn_act_impl.2}
  #allocation0 [shape = 'u32[]', space=smem, size = 0x4, offset = 0x4, fixed_abs, tag = 'smem constant byte address 0x4 - core index']
  #allocation1 [shape = 'u32[144,128]{1,0:T(1,128)}', space=vmem, size = 0x12000, scoped, tag = 'internal scratch']
  %s0 = inlined_call_operand.vmem [shape: bf16[1,512,128], index: 0, kind: input, shape index: {}]
  %s1 = inlined_call_operand.vmem [shape: bf16[1,128,128], index: 1, kind: input, shape index: {}]
  %s2 = inlined_call_operand.vmem [shape: f32[1,4,8,128], index: 2, kind: output, shape index: {0}]
  %s3 = inlined_call_operand.vmem [shape: f32[1,4,8,128], index: 3, kind: output, shape index: {1}]
  %4 = xla_tuple %s2, %s3
  %s5 = sld [smem:[#allocation0]]
  $region49: #{_conv_bn_act_impl.2} parent=0
    _
  %s7 = ssub.s32 1, %s5
  %s8 = scalar_select 0, %s7, %s5
  loop: start=0, step=1, limit=6
  $region2: #{_conv_bn_act_impl.2} parent=0 // loop_pre_header
    _
  $region3: #{_conv_bn_act_impl.2} parent=0 // loop_header
    %s10 = sphi 0, %s14
    %p11 = scmp.ge.s32.totalorder %s10, 6
    %s17 = sphi 0, %s29
    %s18 = sphi 0, %s25
    %s19 = sphi 0, %s17
    %s20 = sphi 0, %s18
    %s21 = sphi 0, %s19
    %s22 = sphi 0, %s20
    %s34 = sphi 0, %s36
    %s37 = sphi 0, %s34
    %s38 = sphi 0, %s37
    %s54 = sphi 0, %s38
    %s60 = sphi 0, %s62
    %s63 = sphi 0, %s60
    %s64 = sphi 0, %s63
    %s80 = sphi 0, %s64
    %s88 = sphi 0, %s90
    %s91 = sphi 0, %s88
    %s92 = sphi 0, %s91
    %s108 = sphi 0, %s92
    %s116 = sphi 0, %s118
    %s119 = sphi 0, %s116
    %s120 = sphi 0, %s119
    %s136 = sphi 0, %s120
  $region4: #{_conv_bn_act_impl.2} parent=0 // loop_header_branch
    %13 = sbr.rel (%p11) target = $region8
  $region5: #{_conv_bn_act_impl.2} parent=0 // loop_body
    %s15 = ssub.s32 %s10, 1
    %s16 = ssub.s32 %s10, 2
    %s23 = sadd.s32 1, %s18
    %p24 = scmp.ge.s32.totalorder %s23, 4
    %s25 = scalar_select %p24, 0, %s23
    %s26 = sadd.s32 1, %s17
    %s27 = scalar_select %p24, %s26, %s17
    %p28 = scmp.ge.s32.totalorder %s27, 1
    %s29 = scalar_select %p28, 0, %s27
    %s30 = ssub.s32 %s17, %s29
    %s31 = ssub.s32 %s18, %s25
    %s32 = sor.u32 %s30, %s31
    %p33 = scmp.eq.s32.totalorder %s32, 0
    %s35 = sadd.s32 %s34, 1
    %s36 = scalar_select %p33, %s34, %s35
    %p39 = pneg %p33
    %p40 = scmp.eq.s32.totalorder %s10, 3
    %p41 = por %p39, %p40
    %p42 = scmp.ne.s32.totalorder %s34, %s37
    %p43 = scmp.eq.s32.totalorder %s10, 0
    %p44 = por %p42, %p43
    %p45 = scmp.ne.s32.totalorder %s34, %s37
    %p46 = scmp.eq.s32.totalorder %s15, 3
    %p47 = por %p45, %p46
    %p48 = scmp.ne.s32.totalorder %s37, %s38
    %p49 = scmp.eq.s32.totalorder %s15, 0
    %p50 = por %p48, %p49
    %p51 = scmp.ne.s32.totalorder %s37, %s38
    %p52 = scmp.eq.s32.totalorder %s16, 3
    %p53 = por %p51, %p52
    %p55 = scmp.ne.s32.totalorder %s38, %s54
    %p56 = scmp.eq.s32.totalorder %s16, 0
    %p57 = por %p55, %p56
    %s58 = ssub.s32 %s17, %s29
    %p59 = scmp.eq.s32.totalorder %s58, 0
    %s61 = sadd.s32 %s60, 1
    %s62 = scalar_select %p59, %s60, %s61
    %p65 = pneg %p59
    %p66 = scmp.eq.s32.totalorder %s10, 3
    %p67 = por %p65, %p66
    %p68 = scmp.ne.s32.totalorder %s60, %s63
    %p69 = scmp.eq.s32.totalorder %s10, 0
    %p70 = por %p68, %p69
    %p71 = scmp.ne.s32.totalorder %s60, %s63
    %p72 = scmp.eq.s32.totalorder %s15, 3
    %p73 = por %p71, %p72
    %p74 = scmp.ne.s32.totalorder %s63, %s64
    %p75 = scmp.eq.s32.totalorder %s15, 0
    %p76 = por %p74, %p75
    %p77 = scmp.ne.s32.totalorder %s63, %s64
    %p78 = scmp.eq.s32.totalorder %s16, 3
    %p79 = por %p77, %p78
    %p81 = scmp.ne.s32.totalorder %s64, %s80
    %p82 = scmp.eq.s32.totalorder %s16, 0
    %p83 = por %p81, %p82
    %s84 = ssub.s32 %s17, %s29
    %s85 = ssub.s32 %s18, %s25
    %s86 = sor.u32 %s84, %s85
    %p87 = scmp.eq.s32.totalorder %s86, 0
    %s89 = sadd.s32 %s88, 1
    %s90 = scalar_select %p87, %s88, %s89
    %p93 = pneg %p87
    %p94 = scmp.eq.s32.totalorder %s10, 3
    %p95 = por %p93, %p94
    %p96 = scmp.ne.s32.totalorder %s88, %s91
    %p97 = scmp.eq.s32.totalorder %s10, 0
    %p98 = por %p96, %p97
    %p99 = scmp.ne.s32.totalorder %s88, %s91
    %p100 = scmp.eq.s32.totalorder %s15, 3
    %p101 = por %p99, %p100
    %p102 = scmp.ne.s32.totalorder %s91, %s92
    %p103 = scmp.eq.s32.totalorder %s15, 0
    %p104 = por %p102, %p103
    %p105 = scmp.ne.s32.totalorder %s91, %s92
    %p106 = scmp.eq.s32.totalorder %s16, 3
    %p107 = por %p105, %p106
    %p109 = scmp.ne.s32.totalorder %s92, %s108
    %p110 = scmp.eq.s32.totalorder %s16, 0
    %p111 = por %p109, %p110
    %s112 = ssub.s32 %s17, %s29
    %s113 = ssub.s32 %s18, %s25
    %s114 = sor.u32 %s112, %s113
    %p115 = scmp.eq.s32.totalorder %s114, 0
    %s117 = sadd.s32 %s116, 1
    %s118 = scalar_select %p115, %s116, %s117
    %p121 = pneg %p115
    %p122 = scmp.eq.s32.totalorder %s10, 3
    %p123 = por %p121, %p122
    %p124 = scmp.ne.s32.totalorder %s116, %s119
    %p125 = scmp.eq.s32.totalorder %s10, 0
    %p126 = por %p124, %p125
    %p127 = scmp.ne.s32.totalorder %s116, %s119
    %p128 = scmp.eq.s32.totalorder %s15, 3
    %p129 = por %p127, %p128
    %p130 = scmp.ne.s32.totalorder %s119, %s120
    %p131 = scmp.eq.s32.totalorder %s15, 0
    %p132 = por %p130, %p131
    %p133 = scmp.ne.s32.totalorder %s119, %s120
    %p134 = scmp.eq.s32.totalorder %s16, 3
    %p135 = por %p133, %p134
    %p137 = scmp.ne.s32.totalorder %s120, %s136
    %p138 = scmp.eq.s32.totalorder %s16, 0
    %p139 = por %p137, %p138
    %p140 = scmp.le.s32.totalorder 1, %s10
    %p141 = scmp.lt.s32.totalorder %s10, 5
    %p142 = pnand %p140, %p141
    %p143 = pneg %p142
    // Predicated region
    $region9: #{_conv_bn_act_impl.2} parent=5 // pred_check
      _
    $region10: #{_conv_bn_act_impl.2} parent=5 // pred_check_branch
      %145 = sbr.rel (%p142) target = $region12
    $region11: #{_conv_bn_act_impl.2} parent=5 // pred_region
      %s146 = ssub.s32 %s10, 1
      // Predicated region
      $region13: #{_conv_bn_act_impl.2} parent=11 // pred_check
        %p147 = pneg %p76
      $region14: #{_conv_bn_act_impl.2} parent=11 // pred_check_branch
        %149 = sbr.rel (%p147) target = $region16
      $region15: #{_conv_bn_act_impl.2} parent=11 // pred_region
        %p150 = scmp.lt.s32.totalorder %s19, 0
        %s151 = scalar_select %p150, %s19, 0
        %s152 = smul.addr %s151, 16
        %s153 = smul.addr %s152, 4
        %s154 = scalar_lea.vmem %s1, %s153
      $region16: #{_conv_bn_act_impl.2} parent=11 // pred_fallthru
        _
    $region12: #{_conv_bn_act_impl.2} parent=5 // pred_fallthru
      _
    %p155 = scmp.lt.s32.totalorder %s10, 4
    // Predicated region
    $region17: #{_conv_bn_act_impl.2} parent=5 // pred_check
      %p156 = pneg %p155
    $region18: #{_conv_bn_act_impl.2} parent=5 // pred_check_branch
      %158 = sbr.rel (%p156) target = $region20
    $region19: #{_conv_bn_act_impl.2} parent=5 // pred_region
      // Predicated region
      $region21: #{_conv_bn_act_impl.2} parent=19 // pred_check
        %p159 = pneg %p44
      $region22: #{_conv_bn_act_impl.2} parent=19 // pred_check_branch
        %161 = sbr.rel (%p159) target = $region24
      $region23: #{_conv_bn_act_impl.2} parent=19 // pred_region
        %s162 = smul.u32 16, %s18
        %p163 = scmp.lt.s32.totalorder %s17, 0
        %s164 = scalar_select %p163, %s17, 0
        %p165 = scmp.lt.s32.totalorder %s162, 63
        %s166 = scalar_select %p165, %s162, 63
        %s167 = smul.addr %s164, 64
        %s168 = sadd.s32 %s166, %s167
        %s169 = smul.addr %s168, 4
        %s170 = scalar_lea.vmem %s0, %s169
        %s171 = smul.u32 16, %s18
      $region24: #{_conv_bn_act_impl.2} parent=19 // pred_fallthru
        _
    $region20: #{_conv_bn_act_impl.2} parent=5 // pred_fallthru
      _
    %p172 = scmp.le.s32.totalorder 1, %s10
    %p173 = scmp.lt.s32.totalorder %s10, 5
    %p174 = pnand %p172, %p173
    %p175 = pneg %p174
    // Predicated region
    $region25: #{_conv_bn_act_impl.2} parent=5 // pred_check
      _
    $region26: #{_conv_bn_act_impl.2} parent=5 // pred_check_branch
      %177 = sbr.rel (%p174) target = $region28
    $region27: #{_conv_bn_act_impl.2} parent=5 // pred_region
      %s178 = ssub.s32 %s10, 1
      %s179 = smul.u32 16, %s20
      %p180 = scmp.lt.s32.totalorder %s19, 0
      %s181 = scalar_select %p180, %s19, 0
      %p182 = scmp.lt.s32.totalorder %s179, 63
      %s183 = scalar_select %p182, %s179, 63
      %s184 = smul.addr %s181, 64
      %s185 = sadd.s32 %s183, %s184
      %s186 = smul.addr %s185, 4
      %s187 = scalar_lea.vmem %s0, %s186
      %p188 = pneg %p50
      %p189 = pneg %p47
      %p190 = scmp.lt.s32.totalorder %s19, 0
      %s191 = scalar_select %p190, %s19, 0
      %s192 = smul.addr %s191, 16
      %s193 = smul.addr %s192, 4
      %s194 = scalar_lea.vmem %s1, %s193
      %p195 = pneg %p76
      %p196 = pneg %p73
      %p197 = pneg %p104
      %p198 = pneg %p101
      %p199 = scmp.lt.s32.totalorder %s19, 0
      %s200 = scalar_select %p199, %s19, 0
      %p201 = scmp.lt.s32.totalorder %s20, 3
      %s202 = scalar_select %p201, %s20, 3
      %s203 = smul.addr %s200, 4
      %s204 = sadd.s32 %s202, %s203
      %s205 = smul.addr %s204, 8
      %s206 = scalar_lea.vmem %s2, %s205
      %p207 = pneg %p132
      %p208 = pneg %p129
      %p209 = scmp.lt.s32.totalorder %s19, 0
      %s210 = scalar_select %p209, %s19, 0
      %p211 = scmp.lt.s32.totalorder %s20, 3
      %s212 = scalar_select %p211, %s20, 3
      %s213 = smul.addr %s210, 4
      %s214 = sadd.s32 %s212, %s213
      %s215 = smul.addr %s214, 8
      %s216 = scalar_lea.vmem %s3, %s215
      %s217 = smul.u32 16, %s20
      %p218 = scmp.lt.s32.totalorder %s19, 0
      %s219 = scalar_select %p218, %s19, 0
      %p220 = scmp.lt.s32.totalorder %s217, 63
      %s221 = scalar_select %p220, %s217, 63
      %s222 = smul.addr %s219, 64
      %s223 = sadd.s32 %s221, %s222
      %s224 = smul.addr %s223, 4
      %s225 = scalar_lea.vmem %s0, %s224
      %s226 = smul.u32 16, %s20
      %p227 = scmp.lt.s32.totalorder %s19, 0
      %s228 = scalar_select %p227, %s19, 0
      %s229 = smul.addr %s228, 16
      %s230 = smul.addr %s229, 4
      %s231 = scalar_lea.vmem %s1, %s230
      %p232 = scmp.lt.s32.totalorder %s19, 0
      %s233 = scalar_select %p232, %s19, 0
      %p234 = scmp.lt.s32.totalorder %s20, 3
      %s235 = scalar_select %p234, %s20, 3
      %s236 = smul.addr %s233, 4
      %s237 = sadd.s32 %s235, %s236
      %s238 = smul.addr %s237, 8
      %s239 = scalar_lea.vmem %s2, %s238
      %p240 = scmp.lt.s32.totalorder %s19, 0
      %s241 = scalar_select %p240, %s19, 0
      %p242 = scmp.lt.s32.totalorder %s20, 3
      %s243 = scalar_select %p242, %s20, 3
      %s244 = smul.addr %s241, 4
      %s245 = sadd.s32 %s243, %s244
      %s246 = smul.addr %s245, 8
      %s247 = scalar_lea.vmem %s3, %s246
      %v249 = vld [vmem:[%s225] sm:$0xf]
      %v250 = vld [vmem:[%s225 + $0x4] sm:$0xf]
      %v251 = vld [vmem:[%s225 + $0x8] sm:$0xf]
      %v252 = vld [vmem:[%s225 + $0xc] sm:$0xf]
      %v253 = vld [vmem:[%s225 + $0x10] sm:$0xf]
      %v254 = vld [vmem:[%s225 + $0x14] sm:$0xf]
      %v255 = vld [vmem:[%s225 + $0x18] sm:$0xf]
      %v256 = vld [vmem:[%s225 + $0x1c] sm:$0xf]
      %v257 = vld [vmem:[%s225 + $0x20] sm:$0xf]
      %v258 = vld [vmem:[%s225 + $0x24] sm:$0xf]
      %v259 = vld [vmem:[%s225 + $0x28] sm:$0xf]
      %v260 = vld [vmem:[%s225 + $0x2c] sm:$0xf]
      %v261 = vld [vmem:[%s225 + $0x30] sm:$0xf]
      %v262 = vld [vmem:[%s225 + $0x34] sm:$0xf]
      %v263 = vld [vmem:[%s225 + $0x38] sm:$0xf]
      %v264 = vld [vmem:[%s225 + $0x3c] sm:$0xf]
      %v265 = vld [vmem:[%s231] sm:$0xf]
      %v266 = vld [vmem:[%s231 + $0x4] sm:$0xf]
      %v267 = vld [vmem:[%s231 + $0x8] sm:$0xf]
      %v268 = vld [vmem:[%s231 + $0xc] sm:$0xf]
      %v269 = vld [vmem:[%s231 + $0x10] sm:$0xf]
      %v270 = vld [vmem:[%s231 + $0x14] sm:$0xf]
      %v271 = vld [vmem:[%s231 + $0x18] sm:$0xf]
      %v272 = vld [vmem:[%s231 + $0x1c] sm:$0xf]
      %v273 = vld [vmem:[%s231 + $0x20] sm:$0xf]
      %v274 = vld [vmem:[%s231 + $0x24] sm:$0xf]
      %v275 = vld [vmem:[%s231 + $0x28] sm:$0xf]
      %v276 = vld [vmem:[%s231 + $0x2c] sm:$0xf]
      %v277 = vld [vmem:[%s231 + $0x30] sm:$0xf]
      %v278 = vld [vmem:[%s231 + $0x34] sm:$0xf]
      %v279 = vld [vmem:[%s231 + $0x38] sm:$0xf]
      %v280 = vld [vmem:[%s231 + $0x3c] sm:$0xf]
      %v297 = vunpack.c.l.b16 %v249
      %v298 = vunpack.c.l.b16 %v250
      %v299 = vunpack.c.l.b16 %v251
      %v300 = vunpack.c.l.b16 %v252
      %v301 = vunpack.c.l.b16 %v253
      %v302 = vunpack.c.l.b16 %v254
      %v303 = vunpack.c.l.b16 %v255
      %v304 = vunpack.c.l.b16 %v256
      %v305 = vunpack.c.l.b16 %v257
      %v306 = vunpack.c.l.b16 %v258
      %v307 = vunpack.c.l.b16 %v259
      %v308 = vunpack.c.l.b16 %v260
      %v309 = vunpack.c.l.b16 %v261
      %v310 = vunpack.c.l.b16 %v262
      %v311 = vunpack.c.l.b16 %v263
      %v312 = vunpack.c.l.b16 %v264
      %v313 = vpack.c.b16 %v298, %v297
      %v314 = vpack.c.b16 %v300, %v299
      %v315 = vpack.c.b16 %v302, %v301
      %v316 = vpack.c.b16 %v304, %v303
      %v317 = vpack.c.b16 %v306, %v305
      %v318 = vpack.c.b16 %v308, %v307
      %v319 = vpack.c.b16 %v310, %v309
      %v320 = vpack.c.b16 %v312, %v311
      %v345 = vunpack.c.l.b16 %v265
      %v346 = vunpack.c.l.b16 %v266
      %v347 = vunpack.c.l.b16 %v267
      %v348 = vunpack.c.l.b16 %v268
      %v349 = vunpack.c.l.b16 %v269
      %v350 = vunpack.c.l.b16 %v270
      %v351 = vunpack.c.l.b16 %v271
      %v352 = vunpack.c.l.b16 %v272
      %v353 = vunpack.c.l.b16 %v273
      %v354 = vunpack.c.l.b16 %v274
      %v355 = vunpack.c.l.b16 %v275
      %v356 = vunpack.c.l.b16 %v276
      %v357 = vunpack.c.l.b16 %v277
      %v358 = vunpack.c.l.b16 %v278
      %v359 = vunpack.c.l.b16 %v279
      %v360 = vunpack.c.l.b16 %v280
      %v361 = vpack.c.b16 %v346, %v345
      %v362 = vpack.c.b16 %v348, %v347
      %v363 = vpack.c.b16 %v350, %v349
      %v364 = vpack.c.b16 %v352, %v351
      %v365 = vpack.c.b16 %v354, %v353
      %v366 = vpack.c.b16 %v356, %v355
      %v367 = vpack.c.b16 %v358, %v357
      %v368 = vpack.c.b16 %v360, %v359
      %377 = vmatprep.subr.bf16.mxu0 0
      %378 = vmatpush1.bf16.msra.mxu0 %v361
      %379 = vmatprep.subr.bf16.mxu0 0
      %380 = vmatpush1.bf16.msra.mxu0 %v362
      %381 = vmatprep.subr.bf16.mxu0 0
      %382 = vmatpush1.bf16.msra.mxu0 %v363
      %383 = vmatprep.subr.bf16.mxu0 0
      %384 = vmatpush1.bf16.msra.mxu0 %v364
      %385 = vmatprep.subr.bf16.mxu0 0
      %386 = vmatpush1.bf16.msra.mxu0 %v365
      %387 = vmatprep.subr.bf16.mxu0 0
      %388 = vmatpush1.bf16.msra.mxu0 %v366
      %389 = vmatprep.subr.bf16.mxu0 0
      %390 = vmatpush1.bf16.msra.mxu0 %v367
      %391 = vmatprep.subr.bf16.mxu0 0
      %392 = vmatpush1.bf16.msra.mxu0 %v368
      %393 = vmatprep.subr.bf16.mxu0 0
      %394 = vmatpush1.bf16.msra.mxu0 0
      %395 = vmatprep.subr.bf16.mxu0 0
      %396 = vmatpush1.bf16.msra.mxu0 0
      %397 = vmatprep.subr.bf16.mxu0 0
      %398 = vmatpush1.bf16.msra.mxu0 0
      %399 = vmatprep.subr.bf16.mxu0 0
      %400 = vmatpush1.bf16.msra.mxu0 0
      %401 = vmatprep.subr.bf16.mxu0 0
      %402 = vmatpush1.bf16.msra.mxu0 0
      %403 = vmatprep.subr.bf16.mxu0 0
      %404 = vmatpush1.bf16.msra.mxu0 0
      %405 = vmatprep.subr.bf16.mxu0 0
      %406 = vmatpush1.bf16.msra.mxu0 0
      %407 = vmatprep.subr.bf16.mxu0 0
      %408 = vmatpush1.bf16.msra.mxu0 0
      %409 = vmatprep.mubr.bf16.mxu0 0
      %410 = vmatmul.mubr.bf16.gmra.mrb[0].mxu0 %v313
      %v411 = vpop.f32.mrb[0].mxu0
      %v412 = vadd.f32 0.0, %v411
      %v413 = vpop.f32.mrb[0].mxu0
      %v414 = vpop.f32.mrb[0].mxu0
      %v415 = vadd.f32 0.0, %v414
      %v416 = vpop.f32.mrb[0].mxu0
      %417 = vmatprep.mubr.bf16.mxu0 0
      %418 = vmatmul.mubr.bf16.gmra.mrb[0].mxu0 %v314
      %v419 = vpop.f32.mrb[0].mxu0
      %v420 = vadd.f32 0.0, %v419
      %v421 = vpop.f32.mrb[0].mxu0
      %v422 = vpop.f32.mrb[0].mxu0
      %v423 = vadd.f32 0.0, %v422
      %v424 = vpop.f32.mrb[0].mxu0
      %425 = vmatprep.mubr.bf16.mxu0 0
      %426 = vmatmul.mubr.bf16.gmra.mrb[0].mxu0 %v315
      %v427 = vpop.f32.mrb[0].mxu0
      %v428 = vadd.f32 0.0, %v427
      %v429 = vpop.f32.mrb[0].mxu0
      %v430 = vpop.f32.mrb[0].mxu0
      %v431 = vadd.f32 0.0, %v430
      %v432 = vpop.f32.mrb[0].mxu0
      %433 = vmatprep.mubr.bf16.mxu0 0
      %434 = vmatmul.mubr.bf16.gmra.mrb[0].mxu0 %v316
      %v435 = vpop.f32.mrb[0].mxu0
      %v436 = vadd.f32 0.0, %v435
      %v437 = vpop.f32.mrb[0].mxu0
      %v438 = vpop.f32.mrb[0].mxu0
      %v439 = vadd.f32 0.0, %v438
      %v440 = vpop.f32.mrb[0].mxu0
      %441 = vmatprep.mubr.bf16.mxu0 0
      %442 = vmatmul.mubr.bf16.gmra.mrb[0].mxu0 %v317
      %v443 = vpop.f32.mrb[0].mxu0
      %v444 = vadd.f32 0.0, %v443
      %v445 = vpop.f32.mrb[0].mxu0
      %v446 = vpop.f32.mrb[0].mxu0
      %v447 = vadd.f32 0.0, %v446
      %v448 = vpop.f32.mrb[0].mxu0
      %449 = vmatprep.mubr.bf16.mxu0 0
      %450 = vmatmul.mubr.bf16.gmra.mrb[0].mxu0 %v318
      %v451 = vpop.f32.mrb[0].mxu0
      %v452 = vadd.f32 0.0, %v451
      %v453 = vpop.f32.mrb[0].mxu0
      %v454 = vpop.f32.mrb[0].mxu0
      %v455 = vadd.f32 0.0, %v454
      %v456 = vpop.f32.mrb[0].mxu0
      %457 = vmatprep.mubr.bf16.mxu0 0
      %458 = vmatmul.mubr.bf16.gmra.mrb[0].mxu0 %v319
      %v459 = vpop.f32.mrb[0].mxu0
      %v460 = vadd.f32 0.0, %v459
      %v461 = vpop.f32.mrb[0].mxu0
      %v462 = vpop.f32.mrb[0].mxu0
      %v463 = vadd.f32 0.0, %v462
      %v464 = vpop.f32.mrb[0].mxu0
      %465 = vmatprep.mubr.bf16.mxu0 0
      %466 = vmatmul.mubr.bf16.gmra.mrb[0].mxu0 %v320
      %v467 = vpop.f32.mrb[0].mxu0
      %v468 = vadd.f32 0.0, %v467
      %v469 = vpop.f32.mrb[0].mxu0
      %v470 = vpop.f32.mrb[0].mxu0
      %v471 = vadd.f32 0.0, %v470
      %v472 = vpop.f32.mrb[0].mxu0
      %473 = vdwg.mxu0
      %v474 = vadd.f32 %v412, %v415
      %v475 = vadd.f32 %v474, %v420
      %v476 = vadd.f32 %v475, %v423
      %v477 = vadd.f32 %v476, %v428
      %v478 = vadd.f32 %v477, %v431
      %v479 = vadd.f32 %v478, %v436
      %v480 = vadd.f32 %v479, %v439
      %v481 = vadd.f32 %v480, %v444
      %v482 = vadd.f32 %v481, %v447
      %v483 = vadd.f32 %v482, %v452
      %v484 = vadd.f32 %v483, %v455
      %v485 = vadd.f32 %v484, %v460
      %v486 = vadd.f32 %v485, %v463
      %v487 = vadd.f32 %v486, %v468
      %v488 = vadd.f32 %v487, %v471
      %489 = vst [vmem:[%s239] sm:$0xff] %v488
      %v490 = vmul.f32 %v412, %v412
      %v491 = vmul.f32 %v415, %v415
      %v492 = vmul.f32 %v420, %v420
      %v493 = vmul.f32 %v423, %v423
      %v494 = vmul.f32 %v428, %v428
      %v495 = vmul.f32 %v431, %v431
      %v496 = vmul.f32 %v436, %v436
      %v497 = vmul.f32 %v439, %v439
      %v498 = vmul.f32 %v444, %v444
      %v499 = vmul.f32 %v447, %v447
      %v500 = vmul.f32 %v452, %v452
      %v501 = vmul.f32 %v455, %v455
      %v502 = vmul.f32 %v460, %v460
      %v503 = vmul.f32 %v463, %v463
      %v504 = vmul.f32 %v468, %v468
      %v505 = vmul.f32 %v471, %v471
      %v506 = vadd.f32 %v490, %v491
      %v507 = vadd.f32 %v506, %v492
      %v508 = vadd.f32 %v507, %v493
      %v509 = vadd.f32 %v508, %v494
      %v510 = vadd.f32 %v509, %v495
      %v511 = vadd.f32 %v510, %v496
      %v512 = vadd.f32 %v511, %v497
      %v513 = vadd.f32 %v512, %v498
      %v514 = vadd.f32 %v513, %v499
      %v515 = vadd.f32 %v514, %v500
      %v516 = vadd.f32 %v515, %v501
      %v517 = vadd.f32 %v516, %v502
      %v518 = vadd.f32 %v517, %v503
      %v519 = vadd.f32 %v518, %v504
      %v520 = vadd.f32 %v519, %v505
      %521 = vst [vmem:[%s247] sm:$0xff] %v520
      %p522 = scmp.lt.s32.totalorder %s19, 0
      %s523 = scalar_select %p522, %s19, 0
      %p524 = scmp.lt.s32.totalorder %s20, 3
      %s525 = scalar_select %p524, %s20, 3
      %s526 = smul.addr %s523, 4
      %s527 = sadd.s32 %s525, %s526
      %s528 = smul.addr %s527, 8
      %s529 = scalar_lea.vmem %s2, %s528
      %p530 = scmp.lt.s32.totalorder %s19, 0
      %s531 = scalar_select %p530, %s19, 0
      %p532 = scmp.lt.s32.totalorder %s20, 3
      %s533 = scalar_select %p532, %s20, 3
      %s534 = smul.addr %s531, 4
      %s535 = sadd.s32 %s533, %s534
      %s536 = smul.addr %s535, 8
      %s537 = scalar_lea.vmem %s3, %s536
      // Predicated region
      $region29: #{_conv_bn_act_impl.2} parent=27 // pred_check
        %p538 = pneg %p101
      $region30: #{_conv_bn_act_impl.2} parent=27 // pred_check_branch
        %540 = sbr.rel (%p538) target = $region32
      $region31: #{_conv_bn_act_impl.2} parent=27 // pred_region
        _
      $region32: #{_conv_bn_act_impl.2} parent=27 // pred_fallthru
        _
      // Predicated region
      $region33: #{_conv_bn_act_impl.2} parent=27 // pred_check
        %p541 = pneg %p129
      $region34: #{_conv_bn_act_impl.2} parent=27 // pred_check_branch
        %543 = sbr.rel (%p541) target = $region36
      $region35: #{_conv_bn_act_impl.2} parent=27 // pred_region
        _
      $region36: #{_conv_bn_act_impl.2} parent=27 // pred_fallthru
        _
    $region28: #{_conv_bn_act_impl.2} parent=5 // pred_fallthru
      _
    %p544 = scmp.le.s32.totalorder 2, %s10
    // Predicated region
    $region37: #{_conv_bn_act_impl.2} parent=5 // pred_check
      %p545 = pneg %p544
    $region38: #{_conv_bn_act_impl.2} parent=5 // pred_check_branch
      %547 = sbr.rel (%p545) target = $region40
    $region39: #{_conv_bn_act_impl.2} parent=5 // pred_region
      %s548 = ssub.s32 %s10, 2
      // Predicated region
      $region41: #{_conv_bn_act_impl.2} parent=39 // pred_check
        %p549 = pneg %p107
      $region42: #{_conv_bn_act_impl.2} parent=39 // pred_check_branch
        %551 = sbr.rel (%p549) target = $region44
      $region43: #{_conv_bn_act_impl.2} parent=39 // pred_region
        %p552 = scmp.lt.s32.totalorder %s21, 0
        %s553 = scalar_select %p552, %s21, 0
        %p554 = scmp.lt.s32.totalorder %s22, 3
        %s555 = scalar_select %p554, %s22, 3
        %s556 = smul.addr %s553, 4
        %s557 = sadd.s32 %s555, %s556
        %s558 = smul.addr %s557, 8
        %s559 = scalar_lea.vmem %s2, %s558
      $region44: #{_conv_bn_act_impl.2} parent=39 // pred_fallthru
        _
      // Predicated region
      $region45: #{_conv_bn_act_impl.2} parent=39 // pred_check
        %p560 = pneg %p135
      $region46: #{_conv_bn_act_impl.2} parent=39 // pred_check_branch
        %562 = sbr.rel (%p560) target = $region48
      $region47: #{_conv_bn_act_impl.2} parent=39 // pred_region
        %p563 = scmp.lt.s32.totalorder %s21, 0
        %s564 = scalar_select %p563, %s21, 0
        %p565 = scmp.lt.s32.totalorder %s22, 3
        %s566 = scalar_select %p565, %s22, 3
        %s567 = smul.addr %s564, 4
        %s568 = sadd.s32 %s566, %s567
        %s569 = smul.addr %s568, 8
        %s570 = scalar_lea.vmem %s3, %s569
      $region48: #{_conv_bn_act_impl.2} parent=39 // pred_fallthru
        _
    $region40: #{_conv_bn_act_impl.2} parent=5 // pred_fallthru
      _
  $region6: #{_conv_bn_act_impl.2} parent=0 // loop_footer
    %s14 = sadd.s32 1, %s10
  $region7: #{_conv_bn_act_impl.2} parent=0 // loop_footer_branch
    %9 = sbr.rel target = $region3
  $region8: #{_conv_bn_act_impl.2} parent=0 // loop_exit
    _

// kernel: _conv_bn_act_impl.3
$region0: #{_conv_bn_act_impl.3}
  #allocation0 [shape = 'u32[]', space=smem, size = 0x4, offset = 0x4, fixed_abs, tag = 'smem constant byte address 0x4 - core index']
  #allocation1 [shape = 'u32[144,128]{1,0:T(1,128)}', space=vmem, size = 0x12000, scoped, tag = 'internal scratch']
  %s0 = inlined_call_operand.vmem [shape: bf16[1,512,128], index: 0, kind: input, shape index: {}]
  %s1 = inlined_call_operand.vmem [shape: bf16[1,128,128], index: 1, kind: input, shape index: {}]
  %s2 = inlined_call_operand.vmem [shape: f32[1,1,128], index: 2, kind: input, shape index: {}]
  %s3 = inlined_call_operand.vmem [shape: f32[1,1,128], index: 3, kind: input, shape index: {}]
  %s4 = inlined_call_operand.vmem [shape: f32[1,512,128], index: 4, kind: output, shape index: {}]
  %s5 = sld [smem:[#allocation0]]
  $region49: #{_conv_bn_act_impl.3} parent=0
    _
  %s7 = ssub.s32 1, %s5
  %s8 = scalar_select 0, %s7, %s5
  loop: start=0, step=1, limit=6
  $region2: #{_conv_bn_act_impl.3} parent=0 // loop_pre_header
    _
  $region3: #{_conv_bn_act_impl.3} parent=0 // loop_header
    %s10 = sphi 0, %s14
    %p11 = scmp.ge.s32.totalorder %s10, 6
    %s17 = sphi 0, %s29
    %s18 = sphi 0, %s25
    %s19 = sphi 0, %s17
    %s20 = sphi 0, %s18
    %s21 = sphi 0, %s19
    %s22 = sphi 0, %s20
    %s34 = sphi 0, %s36
    %s37 = sphi 0, %s34
    %s38 = sphi 0, %s37
    %s54 = sphi 0, %s38
    %s60 = sphi 0, %s62
    %s63 = sphi 0, %s60
    %s64 = sphi 0, %s63
    %s80 = sphi 0, %s64
    %s86 = sphi 0, %s88
    %s89 = sphi 0, %s86
    %s90 = sphi 0, %s89
    %s106 = sphi 0, %s90
    %s112 = sphi 0, %s114
    %s115 = sphi 0, %s112
    %s116 = sphi 0, %s115
    %s132 = sphi 0, %s116
    %s140 = sphi 0, %s142
    %s143 = sphi 0, %s140
    %s144 = sphi 0, %s143
    %s160 = sphi 0, %s144
  $region4: #{_conv_bn_act_impl.3} parent=0 // loop_header_branch
    %13 = sbr.rel (%p11) target = $region8
  $region5: #{_conv_bn_act_impl.3} parent=0 // loop_body
    %s15 = ssub.s32 %s10, 1
    %s16 = ssub.s32 %s10, 2
    %s23 = sadd.s32 1, %s18
    %p24 = scmp.ge.s32.totalorder %s23, 4
    %s25 = scalar_select %p24, 0, %s23
    %s26 = sadd.s32 1, %s17
    %s27 = scalar_select %p24, %s26, %s17
    %p28 = scmp.ge.s32.totalorder %s27, 1
    %s29 = scalar_select %p28, 0, %s27
    %s30 = ssub.s32 %s17, %s29
    %s31 = ssub.s32 %s18, %s25
    %s32 = sor.u32 %s30, %s31
    %p33 = scmp.eq.s32.totalorder %s32, 0
    %s35 = sadd.s32 %s34, 1
    %s36 = scalar_select %p33, %s34, %s35
    %p39 = pneg %p33
    %p40 = scmp.eq.s32.totalorder %s10, 3
    %p41 = por %p39, %p40
    %p42 = scmp.ne.s32.totalorder %s34, %s37
    %p43 = scmp.eq.s32.totalorder %s10, 0
    %p44 = por %p42, %p43
    %p45 = scmp.ne.s32.totalorder %s34, %s37
    %p46 = scmp.eq.s32.totalorder %s15, 3
    %p47 = por %p45, %p46
    %p48 = scmp.ne.s32.totalorder %s37, %s38
    %p49 = scmp.eq.s32.totalorder %s15, 0
    %p50 = por %p48, %p49
    %p51 = scmp.ne.s32.totalorder %s37, %s38
    %p52 = scmp.eq.s32.totalorder %s16, 3
    %p53 = por %p51, %p52
    %p55 = scmp.ne.s32.totalorder %s38, %s54
    %p56 = scmp.eq.s32.totalorder %s16, 0
    %p57 = por %p55, %p56
    %s58 = ssub.s32 %s17, %s29
    %p59 = scmp.eq.s32.totalorder %s58, 0
    %s61 = sadd.s32 %s60, 1
    %s62 = scalar_select %p59, %s60, %s61
    %p65 = pneg %p59
    %p66 = scmp.eq.s32.totalorder %s10, 3
    %p67 = por %p65, %p66
    %p68 = scmp.ne.s32.totalorder %s60, %s63
    %p69 = scmp.eq.s32.totalorder %s10, 0
    %p70 = por %p68, %p69
    %p71 = scmp.ne.s32.totalorder %s60, %s63
    %p72 = scmp.eq.s32.totalorder %s15, 3
    %p73 = por %p71, %p72
    %p74 = scmp.ne.s32.totalorder %s63, %s64
    %p75 = scmp.eq.s32.totalorder %s15, 0
    %p76 = por %p74, %p75
    %p77 = scmp.ne.s32.totalorder %s63, %s64
    %p78 = scmp.eq.s32.totalorder %s16, 3
    %p79 = por %p77, %p78
    %p81 = scmp.ne.s32.totalorder %s64, %s80
    %p82 = scmp.eq.s32.totalorder %s16, 0
    %p83 = por %p81, %p82
    %s84 = ssub.s32 %s17, %s29
    %p85 = scmp.eq.s32.totalorder %s84, 0
    %s87 = sadd.s32 %s86, 1
    %s88 = scalar_select %p85, %s86, %s87
    %p91 = pneg %p85
    %p92 = scmp.eq.s32.totalorder %s10, 3
    %p93 = por %p91, %p92
    %p94 = scmp.ne.s32.totalorder %s86, %s89
    %p95 = scmp.eq.s32.totalorder %s10, 0
    %p96 = por %p94, %p95
    %p97 = scmp.ne.s32.totalorder %s86, %s89
    %p98 = scmp.eq.s32.totalorder %s15, 3
    %p99 = por %p97, %p98
    %p100 = scmp.ne.s32.totalorder %s89, %s90
    %p101 = scmp.eq.s32.totalorder %s15, 0
    %p102 = por %p100, %p101
    %p103 = scmp.ne.s32.totalorder %s89, %s90
    %p104 = scmp.eq.s32.totalorder %s16, 3
    %p105 = por %p103, %p104
    %p107 = scmp.ne.s32.totalorder %s90, %s106
    %p108 = scmp.eq.s32.totalorder %s16, 0
    %p109 = por %p107, %p108
    %s110 = ssub.s32 %s17, %s29
    %p111 = scmp.eq.s32.totalorder %s110, 0
    %s113 = sadd.s32 %s112, 1
    %s114 = scalar_select %p111, %s112, %s113
    %p117 = pneg %p111
    %p118 = scmp.eq.s32.totalorder %s10, 3
    %p119 = por %p117, %p118
    %p120 = scmp.ne.s32.totalorder %s112, %s115
    %p121 = scmp.eq.s32.totalorder %s10, 0
    %p122 = por %p120, %p121
    %p123 = scmp.ne.s32.totalorder %s112, %s115
    %p124 = scmp.eq.s32.totalorder %s15, 3
    %p125 = por %p123, %p124
    %p126 = scmp.ne.s32.totalorder %s115, %s116
    %p127 = scmp.eq.s32.totalorder %s15, 0
    %p128 = por %p126, %p127
    %p129 = scmp.ne.s32.totalorder %s115, %s116
    %p130 = scmp.eq.s32.totalorder %s16, 3
    %p131 = por %p129, %p130
    %p133 = scmp.ne.s32.totalorder %s116, %s132
    %p134 = scmp.eq.s32.totalorder %s16, 0
    %p135 = por %p133, %p134
    %s136 = ssub.s32 %s17, %s29
    %s137 = ssub.s32 %s18, %s25
    %s138 = sor.u32 %s136, %s137
    %p139 = scmp.eq.s32.totalorder %s138, 0
    %s141 = sadd.s32 %s140, 1
    %s142 = scalar_select %p139, %s140, %s141
    %p145 = pneg %p139
    %p146 = scmp.eq.s32.totalorder %s10, 3
    %p147 = por %p145, %p146
    %p148 = scmp.ne.s32.totalorder %s140, %s143
    %p149 = scmp.eq.s32.totalorder %s10, 0
    %p150 = por %p148, %p149
    %p151 = scmp.ne.s32.totalorder %s140, %s143
    %p152 = scmp.eq.s32.totalorder %s15, 3
    %p153 = por %p151, %p152
    %p154 = scmp.ne.s32.totalorder %s143, %s144
    %p155 = scmp.eq.s32.totalorder %s15, 0
    %p156 = por %p154, %p155
    %p157 = scmp.ne.s32.totalorder %s143, %s144
    %p158 = scmp.eq.s32.totalorder %s16, 3
    %p159 = por %p157, %p158
    %p161 = scmp.ne.s32.totalorder %s144, %s160
    %p162 = scmp.eq.s32.totalorder %s16, 0
    %p163 = por %p161, %p162
    %p164 = scmp.le.s32.totalorder 1, %s10
    %p165 = scmp.lt.s32.totalorder %s10, 5
    %p166 = pnand %p164, %p165
    %p167 = pneg %p166
    // Predicated region
    $region9: #{_conv_bn_act_impl.3} parent=5 // pred_check
      _
    $region10: #{_conv_bn_act_impl.3} parent=5 // pred_check_branch
      %169 = sbr.rel (%p166) target = $region12
    $region11: #{_conv_bn_act_impl.3} parent=5 // pred_region
      %s170 = ssub.s32 %s10, 1
      // Predicated region
      $region13: #{_conv_bn_act_impl.3} parent=11 // pred_check
        %p171 = pneg %p76
      $region14: #{_conv_bn_act_impl.3} parent=11 // pred_check_branch
        %173 = sbr.rel (%p171) target = $region16
      $region15: #{_conv_bn_act_impl.3} parent=11 // pred_region
        %p174 = scmp.lt.s32.totalorder %s19, 0
        %s175 = scalar_select %p174, %s19, 0
        %s176 = smul.addr %s175, 16
        %s177 = smul.addr %s176, 4
        %s178 = scalar_lea.vmem %s1, %s177
      $region16: #{_conv_bn_act_impl.3} parent=11 // pred_fallthru
        _
      // Predicated region
      $region17: #{_conv_bn_act_impl.3} parent=11 // pred_check
        %p179 = pneg %p102
      $region18: #{_conv_bn_act_impl.3} parent=11 // pred_check_branch
        %181 = sbr.rel (%p179) target = $region20
      $region19: #{_conv_bn_act_impl.3} parent=11 // pred_region
        %p182 = scmp.lt.s32.totalorder %s19, 0
        %s183 = scalar_select %p182, %s19, 0
        %s184 = scalar_lea.vmem %s2, %s183
      $region20: #{_conv_bn_act_impl.3} parent=11 // pred_fallthru
        _
      // Predicated region
      $region21: #{_conv_bn_act_impl.3} parent=11 // pred_check
        %p185 = pneg %p128
      $region22: #{_conv_bn_act_impl.3} parent=11 // pred_check_branch
        %187 = sbr.rel (%p185) target = $region24
      $region23: #{_conv_bn_act_impl.3} parent=11 // pred_region
        %p188 = scmp.lt.s32.totalorder %s19, 0
        %s189 = scalar_select %p188, %s19, 0
        %s190 = scalar_lea.vmem %s3, %s189
      $region24: #{_conv_bn_act_impl.3} parent=11 // pred_fallthru
        _
    $region12: #{_conv_bn_act_impl.3} parent=5 // pred_fallthru
      _
    %p191 = scmp.lt.s32.totalorder %s10, 4
    // Predicated region
    $region25: #{_conv_bn_act_impl.3} parent=5 // pred_check
      %p192 = pneg %p191
    $region26: #{_conv_bn_act_impl.3} parent=5 // pred_check_branch
      %194 = sbr.rel (%p192) target = $region28
    $region27: #{_conv_bn_act_impl.3} parent=5 // pred_region
      // Predicated region
      $region29: #{_conv_bn_act_impl.3} parent=27 // pred_check
        %p195 = pneg %p44
      $region30: #{_conv_bn_act_impl.3} parent=27 // pred_check_branch
        %197 = sbr.rel (%p195) target = $region32
      $region31: #{_conv_bn_act_impl.3} parent=27 // pred_region
        %s198 = smul.u32 16, %s18
        %p199 = scmp.lt.s32.totalorder %s17, 0
        %s200 = scalar_select %p199, %s17, 0
        %p201 = scmp.lt.s32.totalorder %s198, 63
        %s202 = scalar_select %p201, %s198, 63
        %s203 = smul.addr %s200, 64
        %s204 = sadd.s32 %s202, %s203
        %s205 = smul.addr %s204, 4
        %s206 = scalar_lea.vmem %s0, %s205
        %s207 = smul.u32 16, %s18
      $region32: #{_conv_bn_act_impl.3} parent=27 // pred_fallthru
        _
    $region28: #{_conv_bn_act_impl.3} parent=5 // pred_fallthru
      _
    %p208 = scmp.le.s32.totalorder 1, %s10
    %p209 = scmp.lt.s32.totalorder %s10, 5
    %p210 = pnand %p208, %p209
    %p211 = pneg %p210
    // Predicated region
    $region33: #{_conv_bn_act_impl.3} parent=5 // pred_check
      _
    $region34: #{_conv_bn_act_impl.3} parent=5 // pred_check_branch
      %213 = sbr.rel (%p210) target = $region36
    $region35: #{_conv_bn_act_impl.3} parent=5 // pred_region
      %s214 = ssub.s32 %s10, 1
      %s215 = smul.u32 16, %s20
      %p216 = scmp.lt.s32.totalorder %s19, 0
      %s217 = scalar_select %p216, %s19, 0
      %p218 = scmp.lt.s32.totalorder %s215, 63
      %s219 = scalar_select %p218, %s215, 63
      %s220 = smul.addr %s217, 64
      %s221 = sadd.s32 %s219, %s220
      %s222 = smul.addr %s221, 4
      %s223 = scalar_lea.vmem %s0, %s222
      %p224 = pneg %p50
      %p225 = pneg %p47
      %p226 = scmp.lt.s32.totalorder %s19, 0
      %s227 = scalar_select %p226, %s19, 0
      %s228 = smul.addr %s227, 16
      %s229 = smul.addr %s228, 4
      %s230 = scalar_lea.vmem %s1, %s229
      %p231 = pneg %p76
      %p232 = pneg %p73
      %p233 = scmp.lt.s32.totalorder %s19, 0
      %s234 = scalar_select %p233, %s19, 0
      %s235 = scalar_lea.vmem %s2, %s234
      %p236 = pneg %p102
      %p237 = pneg %p99
      %p238 = scmp.lt.s32.totalorder %s19, 0
      %s239 = scalar_select %p238, %s19, 0
      %s240 = scalar_lea.vmem %s3, %s239
      %p241 = pneg %p128
      %p242 = pneg %p125
      %p243 = pneg %p156
      %p244 = pneg %p153
      %s245 = smul.u32 16, %s20
      %p246 = scmp.lt.s32.totalorder %s19, 0
      %s247 = scalar_select %p246, %s19, 0
      %p248 = scmp.lt.s32.totalorder %s245, 63
      %s249 = scalar_select %p248, %s245, 63
      %s250 = smul.addr %s247, 64
      %s251 = sadd.s32 %s249, %s250
      %s252 = smul.addr %s251, 8
      %s253 = scalar_lea.vmem %s4, %s252
      %s254 = smul.u32 16, %s20
      %p255 = scmp.lt.s32.totalorder %s19, 0
      %s256 = scalar_select %p255, %s19, 0
      %p257 = scmp.lt.s32.totalorder %s254, 63
      %s258 = scalar_select %p257, %s254, 63
      %s259 = smul.addr %s256, 64
      %s260 = sadd.s32 %s258, %s259
      %s261 = smul.addr %s260, 4
      %s262 = scalar_lea.vmem %s0, %s261
      %s263 = smul.u32 16, %s20
      %p264 = scmp.lt.s32.totalorder %s19, 0
      %s265 = scalar_select %p264, %s19, 0
      %s266 = smul.addr %s265, 16
      %s267 = smul.addr %s266, 4
      %s268 = scalar_lea.vmem %s1, %s267
      %p269 = scmp.lt.s32.totalorder %s19, 0
      %s270 = scalar_select %p269, %s19, 0
      %s271 = scalar_lea.vmem %s2, %s270
      %p272 = scmp.lt.s32.totalorder %s19, 0
      %s273 = scalar_select %p272, %s19, 0
      %s274 = scalar_lea.vmem %s3, %s273
      %s275 = smul.u32 16, %s20
      %p276 = scmp.lt.s32.totalorder %s19, 0
      %s277 = scalar_select %p276, %s19, 0
      %p278 = scmp.lt.s32.totalorder %s275, 63
      %s279 = scalar_select %p278, %s275, 63
      %s280 = smul.addr %s277, 64
      %s281 = sadd.s32 %s279, %s280
      %s282 = smul.addr %s281, 8
      %s283 = scalar_lea.vmem %s4, %s282
      %s284 = smul.u32 16, %s20
      %v286 = vld [vmem:[%s262] sm:$0xf]
      %v287 = vld [vmem:[%s262 + $0x4] sm:$0xf]
      %v288 = vld [vmem:[%s262 + $0x8] sm:$0xf]
      %v289 = vld [vmem:[%s262 + $0xc] sm:$0xf]
      %v290 = vld [vmem:[%s262 + $0x10] sm:$0xf]
      %v291 = vld [vmem:[%s262 + $0x14] sm:$0xf]
      %v292 = vld [vmem:[%s262 + $0x18] sm:$0xf]
      %v293 = vld [vmem:[%s262 + $0x1c] sm:$0xf]
      %v294 = vld [vmem:[%s262 + $0x20] sm:$0xf]
      %v295 = vld [vmem:[%s262 + $0x24] sm:$0xf]
      %v296 = vld [vmem:[%s262 + $0x28] sm:$0xf]
      %v297 = vld [vmem:[%s262 + $0x2c] sm:$0xf]
      %v298 = vld [vmem:[%s262 + $0x30] sm:$0xf]
      %v299 = vld [vmem:[%s262 + $0x34] sm:$0xf]
      %v300 = vld [vmem:[%s262 + $0x38] sm:$0xf]
      %v301 = vld [vmem:[%s262 + $0x3c] sm:$0xf]
      %v302 = vld [vmem:[%s268] sm:$0xf]
      %v303 = vld [vmem:[%s268 + $0x4] sm:$0xf]
      %v304 = vld [vmem:[%s268 + $0x8] sm:$0xf]
      %v305 = vld [vmem:[%s268 + $0xc] sm:$0xf]
      %v306 = vld [vmem:[%s268 + $0x10] sm:$0xf]
      %v307 = vld [vmem:[%s268 + $0x14] sm:$0xf]
      %v308 = vld [vmem:[%s268 + $0x18] sm:$0xf]
      %v309 = vld [vmem:[%s268 + $0x1c] sm:$0xf]
      %v310 = vld [vmem:[%s268 + $0x20] sm:$0xf]
      %v311 = vld [vmem:[%s268 + $0x24] sm:$0xf]
      %v312 = vld [vmem:[%s268 + $0x28] sm:$0xf]
      %v313 = vld [vmem:[%s268 + $0x2c] sm:$0xf]
      %v314 = vld [vmem:[%s268 + $0x30] sm:$0xf]
      %v315 = vld [vmem:[%s268 + $0x34] sm:$0xf]
      %v316 = vld [vmem:[%s268 + $0x38] sm:$0xf]
      %v317 = vld [vmem:[%s268 + $0x3c] sm:$0xf]
      %v334 = vunpack.c.l.b16 %v286
      %v335 = vunpack.c.l.b16 %v287
      %v336 = vunpack.c.l.b16 %v288
      %v337 = vunpack.c.l.b16 %v289
      %v338 = vunpack.c.l.b16 %v290
      %v339 = vunpack.c.l.b16 %v291
      %v340 = vunpack.c.l.b16 %v292
      %v341 = vunpack.c.l.b16 %v293
      %v342 = vunpack.c.l.b16 %v294
      %v343 = vunpack.c.l.b16 %v295
      %v344 = vunpack.c.l.b16 %v296
      %v345 = vunpack.c.l.b16 %v297
      %v346 = vunpack.c.l.b16 %v298
      %v347 = vunpack.c.l.b16 %v299
      %v348 = vunpack.c.l.b16 %v300
      %v349 = vunpack.c.l.b16 %v301
      %v350 = vpack.c.b16 %v335, %v334
      %v351 = vpack.c.b16 %v337, %v336
      %v352 = vpack.c.b16 %v339, %v338
      %v353 = vpack.c.b16 %v341, %v340
      %v354 = vpack.c.b16 %v343, %v342
      %v355 = vpack.c.b16 %v345, %v344
      %v356 = vpack.c.b16 %v347, %v346
      %v357 = vpack.c.b16 %v349, %v348
      %v382 = vunpack.c.l.b16 %v302
      %v383 = vunpack.c.l.b16 %v303
      %v384 = vunpack.c.l.b16 %v304
      %v385 = vunpack.c.l.b16 %v305
      %v386 = vunpack.c.l.b16 %v306
      %v387 = vunpack.c.l.b16 %v307
      %v388 = vunpack.c.l.b16 %v308
      %v389 = vunpack.c.l.b16 %v309
      %v390 = vunpack.c.l.b16 %v310
      %v391 = vunpack.c.l.b16 %v311
      %v392 = vunpack.c.l.b16 %v312
      %v393 = vunpack.c.l.b16 %v313
      %v394 = vunpack.c.l.b16 %v314
      %v395 = vunpack.c.l.b16 %v315
      %v396 = vunpack.c.l.b16 %v316
      %v397 = vunpack.c.l.b16 %v317
      %v398 = vpack.c.b16 %v383, %v382
      %v399 = vpack.c.b16 %v385, %v384
      %v400 = vpack.c.b16 %v387, %v386
      %v401 = vpack.c.b16 %v389, %v388
      %v402 = vpack.c.b16 %v391, %v390
      %v403 = vpack.c.b16 %v393, %v392
      %v404 = vpack.c.b16 %v395, %v394
      %v405 = vpack.c.b16 %v397, %v396
      %414 = vmatprep.subr.bf16.mxu0 0
      %415 = vmatpush1.bf16.msra.mxu0 %v398
      %416 = vmatprep.subr.bf16.mxu0 0
      %417 = vmatpush1.bf16.msra.mxu0 %v399
      %418 = vmatprep.subr.bf16.mxu0 0
      %419 = vmatpush1.bf16.msra.mxu0 %v400
      %420 = vmatprep.subr.bf16.mxu0 0
      %421 = vmatpush1.bf16.msra.mxu0 %v401
      %422 = vmatprep.subr.bf16.mxu0 0
      %423 = vmatpush1.bf16.msra.mxu0 %v402
      %424 = vmatprep.subr.bf16.mxu0 0
      %425 = vmatpush1.bf16.msra.mxu0 %v403
      %426 = vmatprep.subr.bf16.mxu0 0
      %427 = vmatpush1.bf16.msra.mxu0 %v404
      %428 = vmatprep.subr.bf16.mxu0 0
      %429 = vmatpush1.bf16.msra.mxu0 %v405
      %430 = vmatprep.subr.bf16.mxu0 0
      %431 = vmatpush1.bf16.msra.mxu0 0
      %432 = vmatprep.subr.bf16.mxu0 0
      %433 = vmatpush1.bf16.msra.mxu0 0
      %434 = vmatprep.subr.bf16.mxu0 0
      %435 = vmatpush1.bf16.msra.mxu0 0
      %436 = vmatprep.subr.bf16.mxu0 0
      %437 = vmatpush1.bf16.msra.mxu0 0
      %438 = vmatprep.subr.bf16.mxu0 0
      %439 = vmatpush1.bf16.msra.mxu0 0
      %440 = vmatprep.subr.bf16.mxu0 0
      %441 = vmatpush1.bf16.msra.mxu0 0
      %442 = vmatprep.subr.bf16.mxu0 0
      %443 = vmatpush1.bf16.msra.mxu0 0
      %444 = vmatprep.subr.bf16.mxu0 0
      %445 = vmatpush1.bf16.msra.mxu0 0
      %446 = vmatprep.mubr.bf16.mxu0 0
      %447 = vmatmul.mubr.bf16.gmra.mrb[0].mxu0 %v350
      %v448 = vpop.f32.mrb[0].mxu0
      %v449 = vadd.f32 0.0, %v448
      %v450 = vpop.f32.mrb[0].mxu0
      %v451 = vpop.f32.mrb[0].mxu0
      %v452 = vadd.f32 0.0, %v451
      %v453 = vpop.f32.mrb[0].mxu0
      %454 = vmatprep.mubr.bf16.mxu0 0
      %455 = vmatmul.mubr.bf16.gmra.mrb[0].mxu0 %v351
      %v456 = vpop.f32.mrb[0].mxu0
      %v457 = vadd.f32 0.0, %v456
      %v458 = vpop.f32.mrb[0].mxu0
      %v459 = vpop.f32.mrb[0].mxu0
      %v460 = vadd.f32 0.0, %v459
      %v461 = vpop.f32.mrb[0].mxu0
      %462 = vmatprep.mubr.bf16.mxu0 0
      %463 = vmatmul.mubr.bf16.gmra.mrb[0].mxu0 %v352
      %v464 = vpop.f32.mrb[0].mxu0
      %v465 = vadd.f32 0.0, %v464
      %v466 = vpop.f32.mrb[0].mxu0
      %v467 = vpop.f32.mrb[0].mxu0
      %v468 = vadd.f32 0.0, %v467
      %v469 = vpop.f32.mrb[0].mxu0
      %470 = vmatprep.mubr.bf16.mxu0 0
      %471 = vmatmul.mubr.bf16.gmra.mrb[0].mxu0 %v353
      %v472 = vpop.f32.mrb[0].mxu0
      %v473 = vadd.f32 0.0, %v472
      %v474 = vpop.f32.mrb[0].mxu0
      %v475 = vpop.f32.mrb[0].mxu0
      %v476 = vadd.f32 0.0, %v475
      %v477 = vpop.f32.mrb[0].mxu0
      %478 = vmatprep.mubr.bf16.mxu0 0
      %479 = vmatmul.mubr.bf16.gmra.mrb[0].mxu0 %v354
      %v480 = vpop.f32.mrb[0].mxu0
      %v481 = vadd.f32 0.0, %v480
      %v482 = vpop.f32.mrb[0].mxu0
      %v483 = vpop.f32.mrb[0].mxu0
      %v484 = vadd.f32 0.0, %v483
      %v485 = vpop.f32.mrb[0].mxu0
      %486 = vmatprep.mubr.bf16.mxu0 0
      %487 = vmatmul.mubr.bf16.gmra.mrb[0].mxu0 %v355
      %v488 = vpop.f32.mrb[0].mxu0
      %v489 = vadd.f32 0.0, %v488
      %v490 = vpop.f32.mrb[0].mxu0
      %v491 = vpop.f32.mrb[0].mxu0
      %v492 = vadd.f32 0.0, %v491
      %v493 = vpop.f32.mrb[0].mxu0
      %494 = vmatprep.mubr.bf16.mxu0 0
      %495 = vmatmul.mubr.bf16.gmra.mrb[0].mxu0 %v356
      %v496 = vpop.f32.mrb[0].mxu0
      %v497 = vadd.f32 0.0, %v496
      %v498 = vpop.f32.mrb[0].mxu0
      %v499 = vpop.f32.mrb[0].mxu0
      %v500 = vadd.f32 0.0, %v499
      %v501 = vpop.f32.mrb[0].mxu0
      %502 = vmatprep.mubr.bf16.mxu0 0
      %503 = vmatmul.mubr.bf16.gmra.mrb[0].mxu0 %v357
      %v504 = vpop.f32.mrb[0].mxu0
      %v505 = vadd.f32 0.0, %v504
      %v506 = vpop.f32.mrb[0].mxu0
      %v507 = vpop.f32.mrb[0].mxu0
      %v508 = vadd.f32 0.0, %v507
      %v509 = vpop.f32.mrb[0].mxu0
      %510 = vdwg.mxu0
      %v511 = vld [vmem:[%s271] sm:$0x1]
      %v513 = vlaneseq
      %v514 = vshrl.u32 %v513, 7
      %v515 = vsub.s32 0, %v514
      %v516 = vrot.slane %v511, %v515
      %v518 = vmul.f32 %v449, %v516
      %v519 = vmul.f32 %v452, %v516
      %v520 = vmul.f32 %v457, %v516
      %v521 = vmul.f32 %v460, %v516
      %v522 = vmul.f32 %v465, %v516
      %v523 = vmul.f32 %v468, %v516
      %v524 = vmul.f32 %v473, %v516
      %v525 = vmul.f32 %v476, %v516
      %v526 = vmul.f32 %v481, %v516
      %v527 = vmul.f32 %v484, %v516
      %v528 = vmul.f32 %v489, %v516
      %v529 = vmul.f32 %v492, %v516
      %v530 = vmul.f32 %v497, %v516
      %v531 = vmul.f32 %v500, %v516
      %v532 = vmul.f32 %v505, %v516
      %v533 = vmul.f32 %v508, %v516
      %v534 = vld [vmem:[%s274] sm:$0x1]
      %v536 = vlaneseq
      %v537 = vshrl.u32 %v536, 7
      %v538 = vsub.s32 0, %v537
      %v539 = vrot.slane %v534, %v538
      %v541 = vadd.f32 %v518, %v539
      %v542 = vadd.f32 %v519, %v539
      %v543 = vadd.f32 %v520, %v539
      %v544 = vadd.f32 %v521, %v539
      %v545 = vadd.f32 %v522, %v539
      %v546 = vadd.f32 %v523, %v539
      %v547 = vadd.f32 %v524, %v539
      %v548 = vadd.f32 %v525, %v539
      %v549 = vadd.f32 %v526, %v539
      %v550 = vadd.f32 %v527, %v539
      %v551 = vadd.f32 %v528, %v539
      %v552 = vadd.f32 %v529, %v539
      %v553 = vadd.f32 %v530, %v539
      %v554 = vadd.f32 %v531, %v539
      %v555 = vadd.f32 %v532, %v539
      %v556 = vadd.f32 %v533, %v539
      %v557 = vmax.f32 %v541, 0.0
      %v558 = vmax.f32 %v542, 0.0
      %v559 = vmax.f32 %v543, 0.0
      %v560 = vmax.f32 %v544, 0.0
      %v561 = vmax.f32 %v545, 0.0
      %v562 = vmax.f32 %v546, 0.0
      %v563 = vmax.f32 %v547, 0.0
      %v564 = vmax.f32 %v548, 0.0
      %v565 = vmax.f32 %v549, 0.0
      %v566 = vmax.f32 %v550, 0.0
      %v567 = vmax.f32 %v551, 0.0
      %v568 = vmax.f32 %v552, 0.0
      %v569 = vmax.f32 %v553, 0.0
      %v570 = vmax.f32 %v554, 0.0
      %v571 = vmax.f32 %v555, 0.0
      %v572 = vmax.f32 %v556, 0.0
      %573 = vst [vmem:[%s283] sm:$0xff] %v557
      %574 = vst [vmem:[%s283 + $0x8] sm:$0xff] %v558
      %575 = vst [vmem:[%s283 + $0x10] sm:$0xff] %v559
      %576 = vst [vmem:[%s283 + $0x18] sm:$0xff] %v560
      %577 = vst [vmem:[%s283 + $0x20] sm:$0xff] %v561
      %578 = vst [vmem:[%s283 + $0x28] sm:$0xff] %v562
      %579 = vst [vmem:[%s283 + $0x30] sm:$0xff] %v563
      %580 = vst [vmem:[%s283 + $0x38] sm:$0xff] %v564
      %581 = vst [vmem:[%s283 + $0x40] sm:$0xff] %v565
      %582 = vst [vmem:[%s283 + $0x48] sm:$0xff] %v566
      %583 = vst [vmem:[%s283 + $0x50] sm:$0xff] %v567
      %584 = vst [vmem:[%s283 + $0x58] sm:$0xff] %v568
      %585 = vst [vmem:[%s283 + $0x60] sm:$0xff] %v569
      %586 = vst [vmem:[%s283 + $0x68] sm:$0xff] %v570
      %587 = vst [vmem:[%s283 + $0x70] sm:$0xff] %v571
      %588 = vst [vmem:[%s283 + $0x78] sm:$0xff] %v572
      %s589 = smul.u32 16, %s20
      %p590 = scmp.lt.s32.totalorder %s19, 0
      %s591 = scalar_select %p590, %s19, 0
      %p592 = scmp.lt.s32.totalorder %s589, 63
      %s593 = scalar_select %p592, %s589, 63
      %s594 = smul.addr %s591, 64
      %s595 = sadd.s32 %s593, %s594
      %s596 = smul.addr %s595, 8
      %s597 = scalar_lea.vmem %s4, %s596
      // Predicated region
      $region37: #{_conv_bn_act_impl.3} parent=35 // pred_check
        %p598 = pneg %p153
      $region38: #{_conv_bn_act_impl.3} parent=35 // pred_check_branch
        %600 = sbr.rel (%p598) target = $region40
      $region39: #{_conv_bn_act_impl.3} parent=35 // pred_region
        %s601 = smul.u32 16, %s20
      $region40: #{_conv_bn_act_impl.3} parent=35 // pred_fallthru
        _
    $region36: #{_conv_bn_act_impl.3} parent=5 // pred_fallthru
      _
    %p602 = scmp.le.s32.totalorder 2, %s10
    // Predicated region
    $region41: #{_conv_bn_act_impl.3} parent=5 // pred_check
      %p603 = pneg %p602
    $region42: #{_conv_bn_act_impl.3} parent=5 // pred_check_branch
      %605 = sbr.rel (%p603) target = $region44
    $region43: #{_conv_bn_act_impl.3} parent=5 // pred_region
      %s606 = ssub.s32 %s10, 2
      // Predicated region
      $region45: #{_conv_bn_act_impl.3} parent=43 // pred_check
        %p607 = pneg %p159
      $region46: #{_conv_bn_act_impl.3} parent=43 // pred_check_branch
        %609 = sbr.rel (%p607) target = $region48
      $region47: #{_conv_bn_act_impl.3} parent=43 // pred_region
        %s610 = smul.u32 16, %s22
        %p611 = scmp.lt.s32.totalorder %s21, 0
        %s612 = scalar_select %p611, %s21, 0
        %p613 = scmp.lt.s32.totalorder %s610, 63
        %s614 = scalar_select %p613, %s610, 63
        %s615 = smul.addr %s612, 64
        %s616 = sadd.s32 %s614, %s615
        %s617 = smul.addr %s616, 8
        %s618 = scalar_lea.vmem %s4, %s617
      $region48: #{_conv_bn_act_impl.3} parent=43 // pred_fallthru
        _
    $region44: #{_conv_bn_act_impl.3} parent=5 // pred_fallthru
      _
  $region6: #{_conv_bn_act_impl.3} parent=0 // loop_footer
    %s14 = sadd.s32 1, %s10
  $region7: #{_conv_bn_act_impl.3} parent=0 // loop_footer_branch
    %9 = sbr.rel target = $region3
  $region8: #{_conv_bn_act_impl.3} parent=0 // loop_exit
    _

</llo_original>
